<compile_context>
chip_gen: v7x
topology: tpu7x:2x2x1
jax: 0.10.0
libtpu: 0.0.40
codegen_flags: <defaults>
</compile_context>

<pallas_src>
import jax
import jax.numpy as jnp
from jax.experimental import pallas as pl
from jax.experimental.pallas import tpu as pltpu


def _round_up(x, m):
    return ((x + m - 1) // m) * m


def _inst_branch_kernel(x_ref, wk_ref, bk_ref, wo_ref, bo_ref,
                        kernel_out_ref, scores_out_ref):
    x = x_ref[...]                                               # (TM, D) f32
    # mask_kernel: Linear(dim, kernel_dim)  -> lane-dense (TM, Kd) store.
    kernel_out_ref[...] = (
        jnp.dot(x, wk_ref[...], preferred_element_type=jnp.float32)
        + bk_ref[...])
    # objectness: Linear(dim, 1) -> (TM, 1) by module contract.
    scores_out_ref[...] = (
        jnp.dot(x, wo_ref[...], preferred_element_type=jnp.float32)
        + bo_ref[...])


def instance_branch_mask_forward(inst_features, params):
    """inst_features: (B, N, dim) ->
       (pred_kernel (B, N, kernel_dim), pred_scores (B, N, 1))."""
    B, N, D = inst_features.shape
    wk = params["mask_kernel_w"]      # (D, kernel_dim)  == torch weight.T
    bk = params["mask_kernel_b"]      # (1, kernel_dim)
    wo = params["objectness_w"]       # (D, 1)
    bo = params["objectness_b"]       # (1, 1)
    Kd = wk.shape[-1]

    # Fold batch into the matmul M dim and pad rows to a sublane multiple.
    M = B * N
    TM = min(512, _round_up(M, 8))    # row-strip size (multiple of 8)
    M_pad = _round_up(M, TM)
    grid_m = M_pad // TM

    x2d = inst_features.reshape(M, D).astype(jnp.float32)
    if M_pad != M:
        x2d = jnp.pad(x2d, ((0, M_pad - M), (0, 0)))

    pred_kernel, pred_scores = pl.pallas_call(
        _inst_branch_kernel,
        out_shape=(
            jax.ShapeDtypeStruct((M_pad, Kd), jnp.float32),
            jax.ShapeDtypeStruct((M_pad, 1), jnp.float32),
        ),
        grid=(grid_m,),
        in_specs=[
            pl.BlockSpec((TM, D), lambda i: (i, 0)),   # activations: tiled
            pl.BlockSpec((D, Kd), lambda i: (0, 0)),   # weights: VMEM-resident
            pl.BlockSpec((1, Kd), lambda i: (0, 0)),
            pl.BlockSpec((D, 1), lambda i: (0, 0)),
            pl.BlockSpec((1, 1), lambda i: (0, 0)),
        ],
        out_specs=(
            pl.BlockSpec((TM, Kd), lambda i: (i, 0)),
            pl.BlockSpec((TM, 1), lambda i: (i, 0)),
        ),
        compiler_params=pltpu.CompilerParams(
            dimension_semantics=("parallel",)),
    )(x2d, wk, bk, wo, bo)

    pred_kernel = pred_kernel[:M].reshape(B, N, Kd)
    pred_scores = pred_scores[:M].reshape(B, N, 1)
    return pred_kernel, pred_scores


def init_params(key, dim, kernel_dim):
    # Mirrors InstanceBranchMask._init_weights:
    #   mask_kernel.weight ~ N(0, 0.01), mask_kernel.bias = 0.
    #   objectness keeps the default nn.Linear init (exact values irrelevant
    #   to the forward semantics, just deterministic here).
    k1, k2, k3 = jax.random.split(key, 3)
    return {
        "mask_kernel_w": 0.01 * jax.random.normal(k1, (dim, kernel_dim), jnp.float32),
        "mask_kernel_b": jnp.zeros((1, kernel_dim), jnp.float32),
        "objectness_w": 0.05 * jax.random.normal(k2, (dim, 1), jnp.float32),
        "objectness_b": 0.01 * jax.random.normal(k3, (1, 1), jnp.float32),
    }


if __name__ == "__main__":
    # Small shapes consistent with the module: batch=2, num queries=8,
    # hidden_dim=32, kernel_dim=128.
    B, N, dim, kernel_dim = 2, 8, 32, 128

    key = jax.random.PRNGKey(0)
    key, kx = jax.random.split(key)
    inst_features = jax.random.normal(kx, (B, N, dim), jnp.float32)
    params = init_params(key, dim, kernel_dim)

    pred_kernel, pred_scores = instance_branch_mask_forward(inst_features, params)
    jax.block_until_ready((pred_kernel, pred_scores))

    assert pred_kernel.shape == (B, N, kernel_dim)
    assert pred_scores.shape == (B, N, 1)

    # Pure-JAX reference check (same math as the PyTorch module).
    x2d = inst_features.reshape(B * N, dim)
    ref_k = (x2d @ params["mask_kernel_w"] + params["mask_kernel_b"]).reshape(B, N, kernel_dim)
    ref_s = (x2d @ params["objectness_w"] + params["objectness_b"]).reshape(B, N, 1)
    assert jnp.allclose(pred_kernel, ref_k, rtol=1e-5, atol=1e-5)
    assert jnp.allclose(pred_scores, ref_s, rtol=1e-5, atol=1e-5)

    print("KERNEL_OK")
</pallas_src>

<mosaic_0001>
module attributes {stable_mosaic.version = 11 : i64} {
  func.func @_inst_branch_kernel(%arg0: i32, %arg1: memref<16x32xf32, #tpu.memory_space<vmem>>, %arg2: memref<32x128xf32, #tpu.memory_space<vmem>>, %arg3: memref<1x128xf32, #tpu.memory_space<vmem>>, %arg4: memref<32x1xf32, #tpu.memory_space<vmem>>, %arg5: memref<1x1xf32, #tpu.memory_space<vmem>>, %arg6: memref<16x128xf32, #tpu.memory_space<vmem>>, %arg7: memref<16x1xf32, #tpu.memory_space<vmem>>) attributes {dimension_semantics = [#tpu.dimension_semantics<parallel>], iteration_bounds = array<i64: 1>, scalar_prefetch = 0 : i64, scratch_operands = 0 : i64, tpu.core_type = #tpu.core_type<tc>, window_params = [{transform_indices = @transform_0, window_bounds = array<i64: 16, 32>}, {pipeline_mode = #tpu.pipeline_mode<synchronous>, transform_indices = @transform_1, window_bounds = array<i64: 32, 128>}, {pipeline_mode = #tpu.pipeline_mode<synchronous>, transform_indices = @transform_2, window_bounds = array<i64: 1, 128>}, {pipeline_mode = #tpu.pipeline_mode<synchronous>, transform_indices = @transform_3, window_bounds = array<i64: 32, 1>}, {pipeline_mode = #tpu.pipeline_mode<synchronous>, transform_indices = @transform_4, window_bounds = array<i64: 1, 1>}, {transform_indices = @transform_5, window_bounds = array<i64: 16, 128>}, {transform_indices = @transform_6, window_bounds = array<i64: 16, 1>}]} {
    %c0 = arith.constant 0 : index
    %c0_0 = arith.constant 0 : index
    %0 = vector.load %arg1[%c0, %c0_0] : memref<16x32xf32, #tpu.memory_space<vmem>>, vector<16x32xf32>
    %c0_1 = arith.constant 0 : index
    %c0_2 = arith.constant 0 : index
    %1 = vector.load %arg2[%c0_1, %c0_2] : memref<32x128xf32, #tpu.memory_space<vmem>>, vector<32x128xf32>
    %cst = arith.constant dense<0.000000e+00> : vector<16x128xf32>
    %2 = tpu.matmul %0, %1, %cst {dimension_numbers = #tpu.dot_dimension_numbers<[1], [0], [0], [1], [0, 0, 1, 1], [], []>} : vector<16x32xf32>, vector<32x128xf32>, vector<16x128xf32> -> vector<16x128xf32>
    %c0_3 = arith.constant 0 : index
    %c0_4 = arith.constant 0 : index
    %3 = vector.load %arg3[%c0_3, %c0_4] : memref<1x128xf32, #tpu.memory_space<vmem>>, vector<1x128xf32>
    %4 = vector.broadcast %3 : vector<1x128xf32> to vector<16x128xf32>
    %5 = arith.addf %2, %4 : vector<16x128xf32>
    %c0_5 = arith.constant 0 : index
    %c0_6 = arith.constant 0 : index
    %6 = vector.load %arg6[%c0_5, %c0_6] : memref<16x128xf32, #tpu.memory_space<vmem>>, vector<16x128xf32>
    tpu.vector_store %arg6[%c0_5, %c0_6], %5 {strides = array<i32>} : memref<16x128xf32, #tpu.memory_space<vmem>>, vector<16x128xf32>,
    %c0_7 = arith.constant 0 : index
    %c0_8 = arith.constant 0 : index
    %7 = vector.load %arg4[%c0_7, %c0_8] : memref<32x1xf32, #tpu.memory_space<vmem>>, vector<32x1xf32>
    %cst_9 = arith.constant dense<0.000000e+00> : vector<16x1xf32>
    %8 = tpu.matmul %0, %7, %cst_9 {dimension_numbers = #tpu.dot_dimension_numbers<[1], [0], [0], [1], [0, 0, 1, 1], [], []>} : vector<16x32xf32>, vector<32x1xf32>, vector<16x1xf32> -> vector<16x1xf32>
    %c0_10 = arith.constant 0 : index
    %c0_11 = arith.constant 0 : index
    %9 = vector.load %arg5[%c0_10, %c0_11] : memref<1x1xf32, #tpu.memory_space<vmem>>, vector<1x1xf32>
    %10 = vector.broadcast %9 : vector<1x1xf32> to vector<16x1xf32>
    %11 = arith.addf %8, %10 : vector<16x1xf32>
    %c0_12 = arith.constant 0 : index
    %c0_13 = arith.constant 0 : index
    %12 = vector.load %arg7[%c0_12, %c0_13] : memref<16x1xf32, #tpu.memory_space<vmem>>, vector<16x1xf32>
    tpu.vector_store %arg7[%c0_12, %c0_13], %11 {strides = array<i32>} : memref<16x1xf32, #tpu.memory_space<vmem>>, vector<16x1xf32>,
    return
  }
  func.func @transform_0(%arg0: i32) -> (i32, i32) {
    %c0_i32 = arith.constant 0 : i32
    %c0_i32_0 = arith.constant 0 : i32
    return %arg0, %c0_i32 : i32, i32
  }
  func.func @transform_1(%arg0: i32) -> (i32, i32) {
    %c0_i32 = arith.constant 0 : i32
    %c0_i32_0 = arith.constant 0 : i32
    %c0_i32_1 = arith.constant 0 : i32
    return %c0_i32, %c0_i32_0 : i32, i32
  }
  func.func @transform_2(%arg0: i32) -> (i32, i32) {
    %c0_i32 = arith.constant 0 : i32
    %c0_i32_0 = arith.constant 0 : i32
    %c0_i32_1 = arith.constant 0 : i32
    return %c0_i32, %c0_i32_0 : i32, i32
  }
  func.func @transform_3(%arg0: i32) -> (i32, i32) {
    %c0_i32 = arith.constant 0 : i32
    %c0_i32_0 = arith.constant 0 : i32
    %c0_i32_1 = arith.constant 0 : i32
    return %c0_i32, %c0_i32_0 : i32, i32
  }
  func.func @transform_4(%arg0: i32) -> (i32, i32) {
    %c0_i32 = arith.constant 0 : i32
    %c0_i32_0 = arith.constant 0 : i32
    %c0_i32_1 = arith.constant 0 : i32
    return %c0_i32, %c0_i32_0 : i32, i32
  }
  func.func @transform_5(%arg0: i32) -> (i32, i32) {
    %c0_i32 = arith.constant 0 : i32
    %c0_i32_0 = arith.constant 0 : i32
    return %arg0, %c0_i32 : i32, i32
  }
  func.func @transform_6(%arg0: i32) -> (i32, i32) {
    %c0_i32 = arith.constant 0 : i32
    %c0_i32_0 = arith.constant 0 : i32
    return %arg0, %c0_i32 : i32, i32
  }
}

</mosaic_0001>

<llo_original>
// kernel: tpu_custom_call.1
$region0: #{tpu_custom_call.1}
  #allocation0 [shape = 'u32[]', space=smem, size = 0x4, offset = 0x4, fixed_abs, tag = 'smem constant byte address 0x4 - core index']
  #allocation1 [shape = 'u32[144,128]{1,0:T(1,128)}', space=vmem, size = 0x12000, scoped, tag = 'internal scratch']
  #allocation2 [shape = 'f32[1,1]{1,0:T(1,128)S(1)}', space=vmem, size = 0x200, scoped, tag = 'scoped memory for tpu_custom_call.1']
  %s0 = inlined_call_operand.hbm [shape: f32[16,32], index: 0, kind: input, shape index: {}]
  %s1 = inlined_call_operand.vmem [shape: f32[32,128], index: 1, kind: input, shape index: {}]
  %s2 = inlined_call_operand.vmem [shape: f32[1,128], index: 2, kind: input, shape index: {}]
  %s3 = inlined_call_operand.vmem [shape: f32[32,1], index: 3, kind: input, shape index: {}]
  %s4 = inlined_call_operand.<no memory space> [shape: f32[1,1], index: 4, kind: input, shape index: {}]
  %s5 = inlined_call_operand.hbm [shape: f32[16,128], index: 5, kind: output, shape index: {0}]
  %s6 = inlined_call_operand.vmem [shape: f32[16,1], index: 6, kind: output, shape index: {1}]
  %7 = xla_tuple %s5, %s6
  %s8 = sld [smem:[#allocation0]]
  $region42: #{tpu_custom_call.1} parent=0
    _
  %s10 = ssub.s32 1, %s8
  %s11 = scalar_select 0, %s10, %s8
  %v12 = vstv %s4
  %13 = vst [vmem:[#allocation2] sm:$0x1] %v12
  $region1: #{tpu_custom_call.1} parent=0
    #allocation3 [shape = 'u8[8192]{0}', space=vmem, size = 0x2000, scoped, tag = 'input window, operand 0, single buffered']
    #allocation4 [shape = 's32[1]{0}', space=sflag, size = 0x4, scoped, tag = 'scoped memory for tpu_custom_call.1']
    #allocation5 [shape = 's32[1]{0}', space=sflag, size = 0x4, scoped, tag = 'scoped memory for tpu_custom_call.1']
    #allocation6 [shape = 'u8[8192]{0}', space=vmem, size = 0x2000, scoped, tag = 'output window, operand 0, single buffered']
    %14 = vsyncpa [#allocation4], 0
    %15 = vsyncpa [#allocation5], 0
    // Predicated region
    $region2: #{tpu_custom_call.1} parent=1 // pred_check
      _
    $region3: #{tpu_custom_call.1} parent=1 // pred_check_branch
      %17 = sbr.rel (0) target = $region5
    $region4: #{tpu_custom_call.1} parent=1 // pred_region
      %s19 = ssub.s32 256, 256
      %20 = vsyncadd [#allocation4], %s19
      %s21 = sshll.u32 [#allocation3], 4
      %s22 = int_to_ptr.vmem [resolvable:$true] %s21
      %27 = dma.hbm_to_vmem [thread:$0]  %s0, 256, %s22, [#allocation4], 128, 128, 8
    $region5: #{tpu_custom_call.1} parent=1 // pred_fallthru
      _
    // Predicated region
    $region6: #{tpu_custom_call.1} parent=1 // pred_check
      _
    $region7: #{tpu_custom_call.1} parent=1 // pred_check_branch
      %29 = sbr.rel (0) target = $region9
    $region8: #{tpu_custom_call.1} parent=1 // pred_region
      _
    $region9: #{tpu_custom_call.1} parent=1 // pred_fallthru
      _
    // Predicated region
    $region10: #{tpu_custom_call.1} parent=1 // pred_check
      _
    $region11: #{tpu_custom_call.1} parent=1 // pred_check_branch
      %31 = sbr.rel (0) target = $region13
    $region12: #{tpu_custom_call.1} parent=1 // pred_region
      _
    $region13: #{tpu_custom_call.1} parent=1 // pred_fallthru
      _
    // Predicated region
    $region14: #{tpu_custom_call.1} parent=1 // pred_check
      _
    $region15: #{tpu_custom_call.1} parent=1 // pred_check_branch
      %33 = sbr.rel (0) target = $region17
    $region16: #{tpu_custom_call.1} parent=1 // pred_region
      _
    $region17: #{tpu_custom_call.1} parent=1 // pred_fallthru
      _
    // Predicated region
    $region18: #{tpu_custom_call.1} parent=1 // pred_check
      _
    $region19: #{tpu_custom_call.1} parent=1 // pred_check_branch
      %35 = sbr.rel (0) target = $region21
    $region20: #{tpu_custom_call.1} parent=1 // pred_region
      _
    $region21: #{tpu_custom_call.1} parent=1 // pred_fallthru
      _
    // Predicated region
    $region22: #{tpu_custom_call.1} parent=1 // pred_check
      _
    $region23: #{tpu_custom_call.1} parent=1 // pred_check_branch
      %37 = sbr.rel (0) target = $region25
    $region24: #{tpu_custom_call.1} parent=1 // pred_region
      %38 = dma.done [#allocation4], 256
    $region25: #{tpu_custom_call.1} parent=1 // pred_fallthru
      _
    %v39 = vld [vmem:[#allocation3] sm:$0xff]
    %v40 = vld [vmem:[#allocation3 + $0x8] sm:$0xff]
    %v41 = vld [vmem:[%s1] sm:$0xff]
    %v42 = vld [vmem:[%s1 + $0x8] sm:$0xff]
    %v43 = vld [vmem:[%s1 + $0x10] sm:$0xff]
    %v44 = vld [vmem:[%s1 + $0x18] sm:$0xff]
    %v45 = vld [vmem:[%s2] sm:$0x1]
    %v47 = vlaneseq
    %v48 = vshrl.u32 %v47, 7
    %v49 = vsub.s32 0, %v48
    %v50 = vrot.slane %v45, %v49
    %vm52 = vcmask 261120
    %v54 = vsel %vm52, %v39, 0
    %v57 = vsel %vm52, %v40, 0
    %59 = vmatprep.subr.mxu0 0.0
    %60 = vmatpush1.msra.mxu0 %v41
    %61 = vmatprep.subr.mxu0 0.0
    %62 = vmatpush1.msra.mxu0 %v42
    %63 = vmatprep.subr.mxu0 0.0
    %64 = vmatpush1.msra.mxu0 %v43
    %65 = vmatprep.subr.mxu0 0.0
    %66 = vmatpush1.msra.mxu0 %v44
    %67 = vmatprep.subr.mxu0 0.0
    %68 = vmatpush1.msra.mxu0 0.0
    %69 = vmatprep.subr.mxu0 0.0
    %70 = vmatpush1.msra.mxu0 0.0
    %71 = vmatprep.subr.mxu0 0.0
    %72 = vmatpush1.msra.mxu0 0.0
    %73 = vmatprep.subr.mxu0 0.0
    %74 = vmatpush1.msra.mxu0 0.0
    %75 = vmatprep.subr.mxu0 0.0
    %76 = vmatpush1.msra.mxu0 0.0
    %77 = vmatprep.subr.mxu0 0.0
    %78 = vmatpush1.msra.mxu0 0.0
    %79 = vmatprep.subr.mxu0 0.0
    %80 = vmatpush1.msra.mxu0 0.0
    %81 = vmatprep.subr.mxu0 0.0
    %82 = vmatpush1.msra.mxu0 0.0
    %83 = vmatprep.subr.mxu0 0.0
    %84 = vmatpush1.msra.mxu0 0.0
    %85 = vmatprep.subr.mxu0 0.0
    %86 = vmatpush1.msra.mxu0 0.0
    %87 = vmatprep.subr.mxu0 0.0
    %88 = vmatpush1.msra.mxu0 0.0
    %89 = vmatprep.subr.mxu0 0.0
    %90 = vmatpush1.msra.mxu0 0.0
    %91 = vmatprep.subr.mxu0 0.0
    %92 = vmatpush1.msra.mxu0 0.0
    %93 = vmatprep.subr.mxu0 0.0
    %94 = vmatpush1.msra.mxu0 0.0
    %95 = vmatprep.subr.mxu0 0.0
    %96 = vmatpush1.msra.mxu0 0.0
    %97 = vmatprep.subr.mxu0 0.0
    %98 = vmatpush1.msra.mxu0 0.0
    %99 = vmatprep.subr.mxu0 0.0
    %100 = vmatpush1.msra.mxu0 0.0
    %101 = vmatprep.subr.mxu0 0.0
    %102 = vmatpush1.msra.mxu0 0.0
    %103 = vmatprep.subr.mxu0 0.0
    %104 = vmatpush1.msra.mxu0 0.0
    %105 = vmatprep.subr.mxu0 0.0
    %106 = vmatpush1.msra.mxu0 0.0
    %107 = vmatprep.subr.mxu0 0.0
    %108 = vmatpush1.msra.mxu0 0.0
    %109 = vmatprep.subr.mxu0 0.0
    %110 = vmatpush1.msra.mxu0 0.0
    %111 = vmatprep.subr.mxu0 0.0
    %112 = vmatpush1.msra.mxu0 0.0
    %113 = vmatprep.subr.mxu0 0.0
    %114 = vmatpush1.msra.mxu0 0.0
    %115 = vmatprep.subr.mxu0 0.0
    %116 = vmatpush1.msra.mxu0 0.0
    %117 = vmatprep.subr.mxu0 0.0
    %118 = vmatpush1.msra.mxu0 0.0
    %119 = vmatprep.subr.mxu0 0.0
    %120 = vmatpush1.msra.mxu0 0.0
    %121 = vmatprep.subr.mxu0 0.0
    %122 = vmatpush1.msra.mxu0 0.0
    %123 = vmatprep.mubr.f32.mxu0 0.0
    %124 = vmatmul.mubr.f32.gmra.mrb[0].mxu0 %v54
    %v125 = vpop.f32.mrb[0].mxu0
    %v126 = vadd.f32 %v50, %v125
    %v127 = vpop.f32.mrb[0].mxu0
    %128 = vmatprep.mubr.f32.mxu0 0.0
    %129 = vmatmul.mubr.f32.gmra.mrb[0].mxu0 %v57
    %v130 = vpop.f32.mrb[0].mxu0
    %v131 = vadd.f32 %v50, %v130
    %v132 = vpop.f32.mrb[0].mxu0
    %133 = vdwg.mxu0
    %134 = vst [vmem:[#allocation6] sm:$0xff] %v126
    %135 = vst [vmem:[#allocation6 + $0x8] sm:$0xff] %v131
    %v136 = vld [vmem:[%s3] sm:$0xff]
    %v137 = vld [vmem:[%s3 + $0x8] sm:$0xff]
    %v138 = vld [vmem:[%s3 + $0x10] sm:$0xff]
    %v139 = vld [vmem:[%s3 + $0x18] sm:$0xff]
    %v140 = vld [vmem:[#allocation2] sm:$0x1]
    %v142 = vlaneseq
    %v143 = vshrl.u32 %v142, 7
    %v144 = vsub.s32 0, %v143
    %v145 = vrot.slane %v140, %v144
    %147 = vmatprep.subr.mxu0 0.0
    %148 = vmatpush1.msra.mxu0 %v136
    %149 = vmatprep.subr.mxu0 0.0
    %150 = vmatpush1.msra.mxu0 %v137
    %151 = vmatprep.subr.mxu0 0.0
    %152 = vmatpush1.msra.mxu0 %v138
    %153 = vmatprep.subr.mxu0 0.0
    %154 = vmatpush1.msra.mxu0 %v139
    %155 = vmatprep.subr.mxu0 0.0
    %156 = vmatpush1.msra.mxu0 0.0
    %157 = vmatprep.subr.mxu0 0.0
    %158 = vmatpush1.msra.mxu0 0.0
    %159 = vmatprep.subr.mxu0 0.0
    %160 = vmatpush1.msra.mxu0 0.0
    %161 = vmatprep.subr.mxu0 0.0
    %162 = vmatpush1.msra.mxu0 0.0
    %163 = vmatprep.subr.mxu0 0.0
    %164 = vmatpush1.msra.mxu0 0.0
    %165 = vmatprep.subr.mxu0 0.0
    %166 = vmatpush1.msra.mxu0 0.0
    %167 = vmatprep.subr.mxu0 0.0
    %168 = vmatpush1.msra.mxu0 0.0
    %169 = vmatprep.subr.mxu0 0.0
    %170 = vmatpush1.msra.mxu0 0.0
    %171 = vmatprep.subr.mxu0 0.0
    %172 = vmatpush1.msra.mxu0 0.0
    %173 = vmatprep.subr.mxu0 0.0
    %174 = vmatpush1.msra.mxu0 0.0
    %175 = vmatprep.subr.mxu0 0.0
    %176 = vmatpush1.msra.mxu0 0.0
    %177 = vmatprep.subr.mxu0 0.0
    %178 = vmatpush1.msra.mxu0 0.0
    %179 = vmatprep.subr.mxu0 0.0
    %180 = vmatpush1.msra.mxu0 0.0
    %181 = vmatprep.subr.mxu0 0.0
    %182 = vmatpush1.msra.mxu0 0.0
    %183 = vmatprep.subr.mxu0 0.0
    %184 = vmatpush1.msra.mxu0 0.0
    %185 = vmatprep.subr.mxu0 0.0
    %186 = vmatpush1.msra.mxu0 0.0
    %187 = vmatprep.subr.mxu0 0.0
    %188 = vmatpush1.msra.mxu0 0.0
    %189 = vmatprep.subr.mxu0 0.0
    %190 = vmatpush1.msra.mxu0 0.0
    %191 = vmatprep.subr.mxu0 0.0
    %192 = vmatpush1.msra.mxu0 0.0
    %193 = vmatprep.subr.mxu0 0.0
    %194 = vmatpush1.msra.mxu0 0.0
    %195 = vmatprep.subr.mxu0 0.0
    %196 = vmatpush1.msra.mxu0 0.0
    %197 = vmatprep.subr.mxu0 0.0
    %198 = vmatpush1.msra.mxu0 0.0
    %199 = vmatprep.subr.mxu0 0.0
    %200 = vmatpush1.msra.mxu0 0.0
    %201 = vmatprep.subr.mxu0 0.0
    %202 = vmatpush1.msra.mxu0 0.0
    %203 = vmatprep.subr.mxu0 0.0
    %204 = vmatpush1.msra.mxu0 0.0
    %205 = vmatprep.subr.mxu0 0.0
    %206 = vmatpush1.msra.mxu0 0.0
    %207 = vmatprep.subr.mxu0 0.0
    %208 = vmatpush1.msra.mxu0 0.0
    %209 = vmatprep.subr.mxu0 0.0
    %210 = vmatpush1.msra.mxu0 0.0
    %211 = vmatprep.mubr.f32.mxu0 0.0
    %212 = vmatmul.mubr.f32.gmra.mrb[0].mxu0 %v54
    %v213 = vpop.f32.mrb[0].mxu0
    %v214 = vadd.f32 %v145, %v213
    %v215 = vpop.f32.mrb[0].mxu0
    %216 = vmatprep.mubr.f32.mxu0 0.0
    %217 = vmatmul.mubr.f32.gmra.mrb[0].mxu0 %v57
    %v218 = vpop.f32.mrb[0].mxu0
    %v219 = vadd.f32 %v145, %v218
    %v220 = vpop.f32.mrb[0].mxu0
    %221 = vdwg.mxu0
    %vm222 = vcmask 7168
    %223 = vst.msk [vmem:[%s6] sm:$0xff] %vm222, %v214
    %224 = vst.msk [vmem:[%s6 + $0x8] sm:$0xff] %vm222, %v219
    // Predicated region
    $region26: #{tpu_custom_call.1} parent=1 // pred_check
      _
    $region27: #{tpu_custom_call.1} parent=1 // pred_check_branch
      %226 = sbr.rel (0) target = $region29
    $region28: #{tpu_custom_call.1} parent=1 // pred_region
      %s228 = ssub.s32 256, 256
      %229 = vsyncadd [#allocation5], %s228
      %s230 = sshll.u32 [#allocation6], 4
      %s231 = int_to_ptr.vmem [resolvable:$true] %s230
      %236 = dma.vmem_to_hbm [thread:$0]  %s231, 256, %s5, [#allocation5], 128, 128, 8
    $region29: #{tpu_custom_call.1} parent=1 // pred_fallthru
      _
    // Predicated region
    $region30: #{tpu_custom_call.1} parent=1 // pred_check
      _
    $region31: #{tpu_custom_call.1} parent=1 // pred_check_branch
      %238 = sbr.rel (0) target = $region33
    $region32: #{tpu_custom_call.1} parent=1 // pred_region
      _
    $region33: #{tpu_custom_call.1} parent=1 // pred_fallthru
      _
    // Predicated region
    $region34: #{tpu_custom_call.1} parent=1 // pred_check
      _
    $region35: #{tpu_custom_call.1} parent=1 // pred_check_branch
      %240 = sbr.rel (0) target = $region37
    $region36: #{tpu_custom_call.1} parent=1 // pred_region
      %241 = dma.done [#allocation5], 256
    $region37: #{tpu_custom_call.1} parent=1 // pred_fallthru
      _
    // Predicated region
    $region38: #{tpu_custom_call.1} parent=1 // pred_check
      _
    $region39: #{tpu_custom_call.1} parent=1 // pred_check_branch
      %243 = sbr.rel (0) target = $region41
    $region40: #{tpu_custom_call.1} parent=1 // pred_region
      _
    $region41: #{tpu_custom_call.1} parent=1 // pred_fallthru
      _
    %244 = vsyncpa [#allocation4], 1
    %245 = vsyncpa [#allocation5], 1

</llo_original>
